<compile_context>
chip_gen: v5e
topology: v5e:2x2
jax: 0.10.0
libtpu: 0.0.40
codegen_flags: <defaults>
</compile_context>

<pallas_src>
import functools

import jax
import jax.numpy as jnp
from jax import lax
from jax.experimental import pallas as pl
from jax.experimental.pallas import tpu as pltpu


def _build_pos_enc(seq_len: int, d_model: int) -> jnp.ndarray:
    """Replicates the *source module's* pos_enc construction exactly.

    Note: the PyTorch module gives every column i its own frequency
    1/10000**(i/d_model) and applies sin to even columns / cos to odd columns
    (this intentionally differs from the canonical paired-frequency recipe).
    """
    positions = jnp.arange(seq_len, dtype=jnp.float32)[:, None]      # (S, 1)
    dims = jnp.arange(d_model, dtype=jnp.float32)                    # (D,)
    div_term = 1.0 / jnp.power(10000.0, dims / float(d_model))       # (D,)
    pe = positions * div_term                                        # (S, D)
    even = (jnp.arange(d_model) % 2) == 0
    pe = jnp.where(even[None, :], jnp.sin(pe), jnp.cos(pe))
    return pe.astype(jnp.float32)


def _lowbias32(x):
    """Full 3-round 32-bit avalanche hash; used only on the per-block scalar."""
    x = x ^ (x >> 16)
    x = x * jnp.uint32(0x7FEB352D)
    x = x ^ (x >> 15)
    x = x * jnp.uint32(0x846CA68B)
    x = x ^ (x >> 16)
    return x


def _pe_dropout_kernel(x_ref, pe_ref, o_ref, *, p_dropout: float, seed: int):
    # x_ref / pe_ref / o_ref: (TS, D) tiles (batch dim squeezed out).
    y = x_ref[...] + pe_ref[...]

    if p_dropout > 0.0:
        # Unique key per grid block (flat block id) -> independent streams
        # across tiles / cores, regardless of which grid axis is outermost.
        block_id = (pl.program_id(0) * pl.num_programs(1)
                    + pl.program_id(1)).astype(jnp.uint32)
        block_key = _lowbias32(jnp.uint32(seed & 0xFFFFFFFF) ^ block_id)

        rows = lax.broadcasted_iota(jnp.int32, y.shape, 0)
        cols = lax.broadcasted_iota(jnp.int32, y.shape, 1)
        local = (rows * y.shape[1] + cols).astype(jnp.uint32)

        # murmur3-style finalizer minus the leading xorshift: 2 multiplies per
        # element (vs 3 in lowbias32); plenty of avalanche for a dropout mask.
        h = local ^ block_key
        h = h * jnp.uint32(0x85EBCA6B)
        h = h ^ (h >> 13)
        h = h * jnp.uint32(0xC2B2AE35)
        h = h ^ (h >> 16)

        # Integer-domain threshold: P(drop) = thr / 2^32 ~= p (no float convert).
        thr = min(int(round(p_dropout * (1 << 32))), (1 << 32) - 1)
        scale = jnp.asarray(1.0 / (1.0 - p_dropout), y.dtype)
        y = jnp.where(h >= jnp.uint32(thr), y * scale, jnp.zeros_like(y))

    o_ref[...] = y.astype(o_ref.dtype)


def _choose_seq_tile(S: int, D: int, itemsize: int, target_bytes: int = 2 << 20) -> int:
    """Largest sublane-aligned row count whose (TS, D) block is ~<= target_bytes."""
    sub = max(8, 32 // max(1, itemsize))       # 8 for f32, 16 for bf16, 32 for int8/fp8
    rows = (target_bytes // max(1, D * itemsize)) // sub * sub
    rows = max(sub, rows)
    return S if rows >= S else int(rows)


def positional_encoding_forward(x: jnp.ndarray,
                                pos_enc: jnp.ndarray,
                                *,
                                p_dropout: float = 0.1,
                                seed: int = 0,
                                training: bool = True) -> jnp.ndarray:
    """x: (B, S, D); pos_enc: (seq_len_max, D). Returns dropout(x + pos_enc[:S])."""
    B, S, D = x.shape
    pe = pos_enc[:S, :].astype(x.dtype)        # slice like torch, match dtype (halves DMA for bf16)
    p = float(p_dropout) if training else 0.0
    if p >= 1.0:                               # guard: torch drops everything at p=1
        return jnp.zeros_like(x)

    TS = _choose_seq_tile(S, D, jnp.dtype(x.dtype).itemsize)
    num_s = pl.cdiv(S, TS)

    if num_s >= 2:
        # Batch innermost: pe block index is constant across the inner B steps,
        # so Pallas skips re-DMAing the pos_enc tile (bandwidth win for B > 1).
        grid = (num_s, B)
        x_map = lambda s, b: (b, s, 0)
        pe_map = lambda s, b: (s, 0)
    else:
        # Single sequence tile: pe reuse is automatic; put B outermost so a
        # v7x megacore has a >=2-extent parallel axis to shard across its 2 TCs.
        grid = (B, num_s)
        x_map = lambda b, s: (b, s, 0)
        pe_map = lambda b, s: (s, 0)

    kernel = functools.partial(_pe_dropout_kernel, p_dropout=p, seed=int(seed))

    return pl.pallas_call(
        kernel,
        out_shape=jax.ShapeDtypeStruct((B, S, D), x.dtype),
        grid=grid,
        in_specs=[
            pl.BlockSpec((pl.Squeezed(), TS, D), x_map),   # x: one (batch, S-tile), kernel sees (TS, D)
            pl.BlockSpec((TS, D), pe_map),                 # pe: matching S-tile, reused across batch
        ],
        out_specs=pl.BlockSpec((pl.Squeezed(), TS, D), x_map),
        compiler_params=pltpu.CompilerParams(
            dimension_semantics=("parallel", "parallel"),  # megacore-safe, stateless mask
            vmem_limit_bytes=32 * 1024 * 1024,
        ),
    )(x, pe)


if __name__ == "__main__":
    # Small, TPU-friendly shapes consistent with (B, seq_len, d_model) input.
    B, S, D = 2, 16, 128
    p_dropout = 0.1

    key = jax.random.PRNGKey(0)
    x = jax.random.normal(key, (B, S, D), dtype=jnp.float32)

    pos_enc = _build_pos_enc(seq_len=64, d_model=D)   # buffer larger than S, sliced in fwd

    out_train = jax.block_until_ready(
        positional_encoding_forward(x, pos_enc, p_dropout=p_dropout, seed=0,
                                    training=True))
    out_eval = jax.block_until_ready(
        positional_encoding_forward(x, pos_enc, p_dropout=p_dropout, training=False))

    # Eval path must match the pure-JAX reference exactly (no dropout).
    ref = x + pos_enc[None, :S, :]
    assert out_train.shape == (B, S, D)
    assert jnp.allclose(out_eval, ref, atol=1e-6), "add path mismatch"

    # Training path: every element is either dropped (0) or kept * 1/(1-p).
    scaled = ref / (1.0 - p_dropout)
    ok = (out_train == 0) | (jnp.abs(out_train - scaled) <= 1e-5)
    assert bool(jnp.all(ok)), "dropout path mismatch"

    # Loose statistical sanity check on the drop rate (p=0.1 over 4096 elems).
    drop_frac = float(jnp.mean((out_train == 0).astype(jnp.float32)))
    assert 0.02 <= drop_frac <= 0.25, f"dropout rate off: {drop_frac}"

    print("KERNEL_OK")
</pallas_src>

<mosaic_0001>
module attributes {stable_mosaic.version = 11 : i64} {
  func.func @_pe_dropout_kernel(%arg0: i32, %arg1: i32, %arg2: memref<1x16x128xf32, #tpu.memory_space<vmem>>, %arg3: memref<16x128xf32, #tpu.memory_space<vmem>>, %arg4: memref<1x16x128xf32, #tpu.memory_space<vmem>>) attributes {dimension_semantics = [#tpu.dimension_semantics<parallel>, #tpu.dimension_semantics<parallel>], iteration_bounds = array<i64: 2, 1>, scalar_prefetch = 0 : i64, scratch_operands = 0 : i64, tpu.core_type = #tpu.core_type<tc>, window_params = [{transform_indices = @transform_0, window_bounds = array<i64: 1, 16, 128>}, {transform_indices = @transform_1, window_bounds = array<i64: 16, 128>}, {transform_indices = @transform_2, window_bounds = array<i64: 1, 16, 128>}]} {
    %c0 = arith.constant 0 : index
    %c0_0 = arith.constant 0 : index
    %c0_1 = arith.constant 0 : index
    %0 = vector.load %arg2[%c0, %c0_0, %c0_1] : memref<1x16x128xf32, #tpu.memory_space<vmem>>, vector<1x16x128xf32>
    %1 = vector.shape_cast %0 : vector<1x16x128xf32> to vector<16x128xf32>
    %c0_2 = arith.constant 0 : index
    %c0_3 = arith.constant 0 : index
    %2 = vector.load %arg3[%c0_2, %c0_3] : memref<16x128xf32, #tpu.memory_space<vmem>>, vector<16x128xf32>
    %3 = arith.addf %1, %2 : vector<16x128xf32>
    %c1_i32 = arith.constant 1 : i32
    %4 = arith.muli %arg0, %c1_i32 : i32
    %5 = arith.addi %4, %arg1 : i32
    %c0_i32 = arith.constant 0 : i32
    %6 = arith.xori %c0_i32, %5 : i32
    %c16_i32 = arith.constant 16 : i32
    %7 = arith.shrui %6, %c16_i32 : i32
    %8 = arith.xori %6, %7 : i32
    %c2146121005_i32 = arith.constant 2146121005 : i32
    %9 = arith.muli %8, %c2146121005_i32 : i32
    %c15_i32 = arith.constant 15 : i32
    %10 = arith.shrui %9, %c15_i32 : i32
    %11 = arith.xori %9, %10 : i32
    %c-2073254261_i32 = arith.constant -2073254261 : i32
    %12 = arith.muli %11, %c-2073254261_i32 : i32
    %c16_i32_4 = arith.constant 16 : i32
    %13 = arith.shrui %12, %c16_i32_4 : i32
    %14 = arith.xori %12, %13 : i32
    %15 = tpu.iota {dimensions = array<i32: 0>} : vector<16x128xi32>
    %16 = tpu.iota {dimensions = array<i32: 1>} : vector<16x128xi32>
    %c128_i32 = arith.constant 128 : i32
    %17 = vector.broadcast %c128_i32 : i32 to vector<16x128xi32>
    %18 = arith.muli %15, %17 : vector<16x128xi32>
    %19 = arith.addi %18, %16 : vector<16x128xi32>
    %20 = vector.broadcast %14 : i32 to vector<16x128xi32>
    %21 = arith.xori %19, %20 : vector<16x128xi32>
    %c-2048144789_i32 = arith.constant -2048144789 : i32
    %22 = vector.broadcast %c-2048144789_i32 : i32 to vector<16x128xi32>
    %23 = arith.muli %21, %22 : vector<16x128xi32>
    %c13_i32 = arith.constant 13 : i32
    %24 = vector.broadcast %c13_i32 : i32 to vector<16x128xi32>
    %25 = arith.shrui %23, %24 : vector<16x128xi32>
    %26 = arith.xori %23, %25 : vector<16x128xi32>
    %c-1028477387_i32 = arith.constant -1028477387 : i32
    %27 = vector.broadcast %c-1028477387_i32 : i32 to vector<16x128xi32>
    %28 = arith.muli %26, %27 : vector<16x128xi32>
    %c16_i32_5 = arith.constant 16 : i32
    %29 = vector.broadcast %c16_i32_5 : i32 to vector<16x128xi32>
    %30 = arith.shrui %28, %29 : vector<16x128xi32>
    %31 = arith.xori %28, %30 : vector<16x128xi32>
    %c429496730_i32 = arith.constant 429496730 : i32
    %32 = vector.broadcast %c429496730_i32 : i32 to vector<16x128xi32>
    %33 = arith.cmpi uge, %31, %32 : vector<16x128xi32>
    %cst = arith.constant 1.11111116 : f32
    %34 = vector.broadcast %cst : f32 to vector<16x128xf32>
    %35 = arith.mulf %3, %34 : vector<16x128xf32>
    %cst_6 = arith.constant 0.000000e+00 : f32
    %36 = vector.broadcast %cst_6 : f32 to vector<16x128xf32>
    %37 = arith.select %33, %35, %36 : vector<16x128xi1>, vector<16x128xf32>
    %c0_7 = arith.constant 0 : index
    %c0_8 = arith.constant 0 : index
    %c0_9 = arith.constant 0 : index
    %38 = vector.load %arg4[%c0_7, %c0_8, %c0_9] : memref<1x16x128xf32, #tpu.memory_space<vmem>>, vector<1x16x128xf32>
    %39 = vector.shape_cast %38 : vector<1x16x128xf32> to vector<16x128xf32>
    %40 = vector.shape_cast %37 : vector<16x128xf32> to vector<1x16x128xf32>
    tpu.vector_store %arg4[%c0_7, %c0_8, %c0_9], %40 {strides = array<i32>} : memref<1x16x128xf32, #tpu.memory_space<vmem>>, vector<1x16x128xf32>,
    return
  }
  func.func @transform_0(%arg0: i32, %arg1: i32) -> (i32, i32, i32) {
    %c0_i32 = arith.constant 0 : i32
    %c0_i32_0 = arith.constant 0 : i32
    return %arg0, %arg1, %c0_i32 : i32, i32, i32
  }
  func.func @transform_1(%arg0: i32, %arg1: i32) -> (i32, i32) {
    %c0_i32 = arith.constant 0 : i32
    %c0_i32_0 = arith.constant 0 : i32
    return %arg1, %c0_i32 : i32, i32
  }
  func.func @transform_2(%arg0: i32, %arg1: i32) -> (i32, i32, i32) {
    %c0_i32 = arith.constant 0 : i32
    %c0_i32_0 = arith.constant 0 : i32
    return %arg0, %arg1, %c0_i32 : i32, i32, i32
  }
}

</mosaic_0001>

<llo_original>
// kernel: tpu_custom_call.1
$region0: #{tpu_custom_call.1}
  #allocation0 [shape = 'u32[]', space=smem, size = 0x4, offset = 0x4, fixed_abs, tag = 'smem constant byte address 0x4 - core index']
  #allocation1 [shape = 'u32[72,128]{1,0:T(1,128)}', space=vmem, size = 0x9000, scoped, tag = 'internal scratch']
  %s0 = inlined_call_operand.hbm [shape: f32[2,16,128], index: 0, kind: input, shape index: {}]
  %s1 = inlined_call_operand.hbm [shape: f32[16,128], index: 1, kind: input, shape index: {}]
  %s2 = inlined_call_operand.hbm [shape: f32[2,16,128], index: 2, kind: output, shape index: {}]
  %s3 = sld [smem:[#allocation0]]
  $region49: #{tpu_custom_call.1} parent=0
    _
  %s5 = ssub.s32 1, %s3
  %s6 = scalar_select 0, %s5, %s3
  $region1: #{tpu_custom_call.1} parent=0
    #allocation2 [shape = 'u8[16384]{0}', space=vmem, size = 0x4000, scoped, tag = 'input window, operand 0']
    #allocation3 [shape = 's32[2]{0}', space=sflag, size = 0x8, scoped, tag = 'scoped memory for tpu_custom_call.1']
    #allocation4 [shape = 's32[2]{0}', space=sflag, size = 0x8, scoped, tag = 'scoped memory for tpu_custom_call.1']
    #allocation5 [shape = 'u8[8192]{0}', space=vmem, size = 0x2000, scoped, tag = 'input window, operand 1, single buffered']
    #allocation6 [shape = 's32[1]{0}', space=sflag, size = 0x4, scoped, tag = 'scoped memory for tpu_custom_call.1']
    #allocation7 [shape = 'u8[16384]{0}', space=vmem, size = 0x4000, scoped, tag = 'output window, operand 0']
    %7 = vsyncpa [#allocation3], 0
    %s8 = scalar_lea.sflag [#allocation3], 1
    %9 = vsyncpa %s8, 0
    %10 = vsyncpa [#allocation6], 0
    %11 = vsyncpa [#allocation4], 0
    %s12 = scalar_lea.sflag [#allocation4], 1
    %13 = vsyncpa %s12, 0
    loop: start=0, step=1, limit=4
    $region2: #{tpu_custom_call.1} parent=1 // loop_pre_header
      _
    $region3: #{tpu_custom_call.1} parent=1 // loop_header
      %s15 = sphi 0, %s19
      %p16 = scmp.ge.s32.totalorder %s15, 4
      %s22 = sphi 0, %s34
      %s23 = sphi 0, %s30
      %s24 = sphi 0, %s22
      %s25 = sphi 0, %s23
      %s26 = sphi 0, %s24
      %s27 = sphi 0, %s25
      %s39 = sphi 0, %s41
      %s42 = sphi 0, %s39
      %s43 = sphi 0, %s42
      %s59 = sphi 0, %s43
      %s65 = sphi 0, %s67
      %s68 = sphi 0, %s65
      %s69 = sphi 0, %s68
      %s85 = sphi 0, %s69
      %s93 = sphi 0, %s95
      %s96 = sphi 0, %s93
      %s97 = sphi 0, %s96
      %s113 = sphi 0, %s97
    $region4: #{tpu_custom_call.1} parent=1 // loop_header_branch
      %18 = sbr.rel (%p16) target = $region8
    $region5: #{tpu_custom_call.1} parent=1 // loop_body
      %s20 = ssub.s32 %s15, 1
      %s21 = ssub.s32 %s15, 2
      %s28 = sadd.s32 1, %s23
      %p29 = scmp.ge.s32.totalorder %s28, 1
      %s30 = scalar_select %p29, 0, %s28
      %s31 = sadd.s32 1, %s22
      %s32 = scalar_select %p29, %s31, %s22
      %p33 = scmp.ge.s32.totalorder %s32, 2
      %s34 = scalar_select %p33, 0, %s32
      %s35 = ssub.s32 %s22, %s34
      %s36 = ssub.s32 %s23, %s30
      %s37 = sor.u32 %s35, %s36
      %p38 = scmp.eq.s32.totalorder %s37, 0
      %s40 = sadd.s32 %s39, 1
      %s41 = scalar_select %p38, %s39, %s40
      %p44 = pneg %p38
      %p45 = scmp.eq.s32.totalorder %s15, 1
      %p46 = por %p44, %p45
      %p47 = scmp.ne.s32.totalorder %s39, %s42
      %p48 = scmp.eq.s32.totalorder %s15, 0
      %p49 = por %p47, %p48
      %p50 = scmp.ne.s32.totalorder %s39, %s42
      %p51 = scmp.eq.s32.totalorder %s20, 1
      %p52 = por %p50, %p51
      %p53 = scmp.ne.s32.totalorder %s42, %s43
      %p54 = scmp.eq.s32.totalorder %s20, 0
      %p55 = por %p53, %p54
      %p56 = scmp.ne.s32.totalorder %s42, %s43
      %p57 = scmp.eq.s32.totalorder %s21, 1
      %p58 = por %p56, %p57
      %p60 = scmp.ne.s32.totalorder %s43, %s59
      %p61 = scmp.eq.s32.totalorder %s21, 0
      %p62 = por %p60, %p61
      %s63 = ssub.s32 %s23, %s30
      %p64 = scmp.eq.s32.totalorder %s63, 0
      %s66 = sadd.s32 %s65, 1
      %s67 = scalar_select %p64, %s65, %s66
      %p70 = pneg %p64
      %p71 = scmp.eq.s32.totalorder %s15, 1
      %p72 = por %p70, %p71
      %p73 = scmp.ne.s32.totalorder %s65, %s68
      %p74 = scmp.eq.s32.totalorder %s15, 0
      %p75 = por %p73, %p74
      %p76 = scmp.ne.s32.totalorder %s65, %s68
      %p77 = scmp.eq.s32.totalorder %s20, 1
      %p78 = por %p76, %p77
      %p79 = scmp.ne.s32.totalorder %s68, %s69
      %p80 = scmp.eq.s32.totalorder %s20, 0
      %p81 = por %p79, %p80
      %p82 = scmp.ne.s32.totalorder %s68, %s69
      %p83 = scmp.eq.s32.totalorder %s21, 1
      %p84 = por %p82, %p83
      %p86 = scmp.ne.s32.totalorder %s69, %s85
      %p87 = scmp.eq.s32.totalorder %s21, 0
      %p88 = por %p86, %p87
      %s89 = ssub.s32 %s22, %s34
      %s90 = ssub.s32 %s23, %s30
      %s91 = sor.u32 %s89, %s90
      %p92 = scmp.eq.s32.totalorder %s91, 0
      %s94 = sadd.s32 %s93, 1
      %s95 = scalar_select %p92, %s93, %s94
      %p98 = pneg %p92
      %p99 = scmp.eq.s32.totalorder %s15, 1
      %p100 = por %p98, %p99
      %p101 = scmp.ne.s32.totalorder %s93, %s96
      %p102 = scmp.eq.s32.totalorder %s15, 0
      %p103 = por %p101, %p102
      %p104 = scmp.ne.s32.totalorder %s93, %s96
      %p105 = scmp.eq.s32.totalorder %s20, 1
      %p106 = por %p104, %p105
      %p107 = scmp.ne.s32.totalorder %s96, %s97
      %p108 = scmp.eq.s32.totalorder %s20, 0
      %p109 = por %p107, %p108
      %p110 = scmp.ne.s32.totalorder %s96, %s97
      %p111 = scmp.eq.s32.totalorder %s21, 1
      %p112 = por %p110, %p111
      %p114 = scmp.ne.s32.totalorder %s97, %s113
      %p115 = scmp.eq.s32.totalorder %s21, 0
      %p116 = por %p114, %p115
      %p117 = scmp.le.s32.totalorder 1, %s15
      %p118 = scmp.lt.s32.totalorder %s15, 3
      %p119 = pnand %p117, %p118
      %p120 = pneg %p119
      // Predicated region
      $region9: #{tpu_custom_call.1} parent=5 // pred_check
        _
      $region10: #{tpu_custom_call.1} parent=5 // pred_check_branch
        %122 = sbr.rel (%p119) target = $region12
      $region11: #{tpu_custom_call.1} parent=5 // pred_region
        %s123 = ssub.s32 %s15, 1
        // Predicated region
        $region13: #{tpu_custom_call.1} parent=11 // pred_check
          %p124 = pneg %p81
        $region14: #{tpu_custom_call.1} parent=11 // pred_check_branch
          %126 = sbr.rel (%p124) target = $region16
        $region15: #{tpu_custom_call.1} parent=11 // pred_region
          %s127 = smul.u32 2, %s25
          %129 = vsyncadd [#allocation6], 0
          %s130 = smul.addr %s127, 8
          %s131 = scalar_lea.hbm %s1, %s130
          %s132 = sshll.u32 %s131, 4
          %s133 = int_to_ptr.hbm [resolvable:$true] %s132
          %s134 = sshll.u32 [#allocation5], 4
          %s135 = int_to_ptr.vmem [resolvable:$true] %s134
          %140 = dma.hbm_to_vmem [thread:$0]  %s133, 256, %s135, [#allocation6], 128, 128, 8
        $region16: #{tpu_custom_call.1} parent=11 // pred_fallthru
          _
      $region12: #{tpu_custom_call.1} parent=5 // pred_fallthru
        _
      %p141 = scmp.lt.s32.totalorder %s15, 2
      // Predicated region
      $region17: #{tpu_custom_call.1} parent=5 // pred_check
        %p142 = pneg %p141
      $region18: #{tpu_custom_call.1} parent=5 // pred_check_branch
        %144 = sbr.rel (%p142) target = $region20
      $region19: #{tpu_custom_call.1} parent=5 // pred_region
        // Predicated region
        $region21: #{tpu_custom_call.1} parent=19 // pred_check
          %p145 = pneg %p49
        $region22: #{tpu_custom_call.1} parent=19 // pred_check_branch
          %147 = sbr.rel (%p145) target = $region24
        $region23: #{tpu_custom_call.1} parent=19 // pred_region
          %s148 = sand.u32 %s39, 1
          %s149 = scalar_lea.sflag [#allocation3], %s148
          %s150 = sand.u32 %s39, 1
          %s151 = smul.addr %s150, 16
          %s152 = scalar_lea.vmem [#allocation2], %s151
          %s153 = smul.u32 2, %s23
          %155 = vsyncadd %s149, 0
          %s156 = smul.addr %s22, 2
          %s157 = sadd.s32 %s153, %s156
          %s158 = smul.addr %s157, 8
          %s159 = scalar_lea.hbm %s0, %s158
          %s160 = sshll.u32 %s159, 4
          %s161 = int_to_ptr.hbm [resolvable:$true] %s160
          %s162 = sshll.u32 %s152, 4
          %s163 = int_to_ptr.vmem [resolvable:$true] %s162
          %168 = dma.hbm_to_vmem [thread:$0]  %s161, 256, %s163, %s149, 128, 128, 8
        $region24: #{tpu_custom_call.1} parent=19 // pred_fallthru
          _
      $region20: #{tpu_custom_call.1} parent=5 // pred_fallthru
        _
      %p169 = scmp.le.s32.totalorder 1, %s15
      %p170 = scmp.lt.s32.totalorder %s15, 3
      %p171 = pnand %p169, %p170
      %p172 = pneg %p171
      // Predicated region
      $region25: #{tpu_custom_call.1} parent=5 // pred_check
        _
      $region26: #{tpu_custom_call.1} parent=5 // pred_check_branch
        %174 = sbr.rel (%p171) target = $region28
      $region27: #{tpu_custom_call.1} parent=5 // pred_region
        %s175 = ssub.s32 %s15, 1
        %s176 = sand.u32 %s42, 1
        %s177 = scalar_lea.sflag [#allocation3], %s176
        %s178 = sand.u32 %s42, 1
        %s179 = smul.addr %s178, 16
        %s180 = scalar_lea.vmem [#allocation2], %s179
        // Predicated region
        $region29: #{tpu_custom_call.1} parent=27 // pred_check
          %p181 = pneg %p55
        $region30: #{tpu_custom_call.1} parent=27 // pred_check_branch
          %183 = sbr.rel (%p181) target = $region32
        $region31: #{tpu_custom_call.1} parent=27 // pred_region
          %185 = dma.done %s177, 256
        $region32: #{tpu_custom_call.1} parent=27 // pred_fallthru
          _
        // Predicated region
        $region33: #{tpu_custom_call.1} parent=27 // pred_check
          %p186 = pneg %p81
        $region34: #{tpu_custom_call.1} parent=27 // pred_check_branch
          %188 = sbr.rel (%p186) target = $region36
        $region35: #{tpu_custom_call.1} parent=27 // pred_region
          %190 = dma.done [#allocation6], 256
        $region36: #{tpu_custom_call.1} parent=27 // pred_fallthru
          _
        %s191 = sand.u32 %s42, 1
        %s192 = scalar_lea.sflag [#allocation3], %s191
        %s193 = sand.u32 %s42, 1
        %s194 = smul.addr %s193, 16
        %s195 = scalar_lea.vmem [#allocation2], %s194
        %p196 = pneg %p55
        %p197 = pneg %p52
        %p198 = pneg %p81
        %p199 = pneg %p78
        %p200 = pneg %p109
        %p201 = pneg %p106
        %s202 = sand.u32 %s96, 1
        %s203 = scalar_lea.sflag [#allocation4], %s202
        %s204 = sand.u32 %s96, 1
        %s205 = smul.addr %s204, 16
        %s206 = scalar_lea.vmem [#allocation7], %s205
        %s207 = smul.u32 2, %s25
        %s208 = smul.u32 2, %s25
        %s209 = smul.u32 2, %s25
        %v210 = vld [vmem:[%s180] sm:$0xff]
        %v211 = vld [vmem:[%s180 + $0x8] sm:$0xff]
        %v212 = vld [vmem:[#allocation5] sm:$0xff]
        %v213 = vld [vmem:[#allocation5 + $0x8] sm:$0xff]
        %v214 = vadd.f32 %v210, %v212
        %v215 = vadd.f32 %v211, %v213
        %s216 = sadd.s32 %s24, %s25
        %s217 = sshrl.u32 %s216, 16
        %s218 = sxor.u32 %s216, %s217
        %s219 = smul.u32 %s218, 2146121005
        %s220 = sshrl.u32 %s219, 15
        %s221 = sxor.u32 %s219, %s220
        %s222 = smul.u32 %s221, 2221713035
        %s223 = sshrl.u32 %s222, 16
        %s224 = sxor.u32 %s222, %s223
        %v225 = vlaneseq
        %v226 = vshrl.u32 %v225, 7
        %v227 = vadd.s32 %v226, 8
        %v228 = vlaneseq
        %v229 = vand.u32 %v228, 127
        %v230 = vmul.u32 %v226, 128
        %v231 = vmul.u32 %v227, 128
        %v232 = vadd.s32 %v230, %v229
        %v233 = vadd.s32 %v231, %v229
        %v234 = vstv %s224
        %v235 = vxor.u32 %v232, %v234
        %v236 = vxor.u32 %v233, %v234
        %v237 = vmul.u32 %v235, 2246822507
        %v238 = vmul.u32 %v236, 2246822507
        %v239 = vshrl.u32 %v237, 13
        %v240 = vshrl.u32 %v238, 13
        %v241 = vxor.u32 %v237, %v239
        %v242 = vxor.u32 %v238, %v240
        %v243 = vmul.u32 %v241, 3266489909
        %v244 = vmul.u32 %v242, 3266489909
        %v245 = vshrl.u32 %v243, 16
        %v246 = vshrl.u32 %v244, 16
        %v247 = vxor.u32 %v243, %v245
        %v248 = vxor.u32 %v244, %v246
        %v249 = vadd.s32 %v247, 2147483648
        %vm251 = vcmp.ge.s32.totalorder %v249, 2576980378
        %v252 = vadd.s32 %v248, 2147483648
        %vm254 = vcmp.ge.s32.totalorder %v252, 2576980378
        %v255 = vmul.f32 %v214, 1.1111112
        %v256 = vmul.f32 %v215, 1.1111112
        %v257 = vsel %vm251, %v255, 0.0
        %v258 = vsel %vm254, %v256, 0.0
        %259 = vst [vmem:[%s206] sm:$0xff] %v257
        %260 = vst [vmem:[%s206 + $0x8] sm:$0xff] %v258
        %s261 = sand.u32 %s96, 1
        %s262 = scalar_lea.sflag [#allocation4], %s261
        %s263 = sand.u32 %s96, 1
        %s264 = smul.addr %s263, 16
        %s265 = scalar_lea.vmem [#allocation7], %s264
        // Predicated region
        $region37: #{tpu_custom_call.1} parent=27 // pred_check
          %p266 = pneg %p106
        $region38: #{tpu_custom_call.1} parent=27 // pred_check_branch
          %268 = sbr.rel (%p266) target = $region40
        $region39: #{tpu_custom_call.1} parent=27 // pred_region
          %s269 = smul.u32 2, %s25
          %271 = vsyncadd %s262, 0
          %s272 = smul.addr %s24, 2
          %s273 = sadd.s32 %s269, %s272
          %s274 = smul.addr %s273, 8
          %s275 = scalar_lea.hbm %s2, %s274
          %s276 = sshll.u32 %s265, 4
          %s277 = int_to_ptr.vmem [resolvable:$true] %s276
          %s278 = sshll.u32 %s275, 4
          %s279 = int_to_ptr.hbm [resolvable:$true] %s278
          %284 = dma.vmem_to_hbm [thread:$0]  %s277, 256, %s279, %s262, 128, 128, 8
        $region40: #{tpu_custom_call.1} parent=27 // pred_fallthru
          _
      $region28: #{tpu_custom_call.1} parent=5 // pred_fallthru
        _
      %p285 = scmp.le.s32.totalorder 2, %s15
      // Predicated region
      $region41: #{tpu_custom_call.1} parent=5 // pred_check
        %p286 = pneg %p285
      $region42: #{tpu_custom_call.1} parent=5 // pred_check_branch
        %288 = sbr.rel (%p286) target = $region44
      $region43: #{tpu_custom_call.1} parent=5 // pred_region
        %s289 = ssub.s32 %s15, 2
        // Predicated region
        $region45: #{tpu_custom_call.1} parent=43 // pred_check
          %p290 = pneg %p112
        $region46: #{tpu_custom_call.1} parent=43 // pred_check_branch
          %292 = sbr.rel (%p290) target = $region48
        $region47: #{tpu_custom_call.1} parent=43 // pred_region
          %s293 = sand.u32 %s97, 1
          %s294 = scalar_lea.sflag [#allocation4], %s293
          %s295 = sand.u32 %s97, 1
          %s296 = smul.addr %s295, 16
          %s297 = scalar_lea.vmem [#allocation7], %s296
          %299 = dma.done %s294, 256
        $region48: #{tpu_custom_call.1} parent=43 // pred_fallthru
          _
      $region44: #{tpu_custom_call.1} parent=5 // pred_fallthru
        _
    $region6: #{tpu_custom_call.1} parent=1 // loop_footer
      %s19 = sadd.s32 1, %s15
    $region7: #{tpu_custom_call.1} parent=1 // loop_footer_branch
      %14 = sbr.rel target = $region3
    $region8: #{tpu_custom_call.1} parent=1 // loop_exit
      _
    %300 = vsyncpa [#allocation3], 1
    %s301 = scalar_lea.sflag [#allocation3], 1
    %302 = vsyncpa %s301, 1
    %303 = vsyncpa [#allocation6], 1
    %304 = vsyncpa [#allocation4], 1
    %s305 = scalar_lea.sflag [#allocation4], 1
    %306 = vsyncpa %s305, 1

</llo_original>
